<compile_context>
chip_gen: v5e
topology: v5e:2x2
jax: 0.10.0
libtpu: 0.0.40
codegen_flags: <defaults>
</compile_context>

<pallas_src>
import numpy as np
import jax
import jax.numpy as jnp
from jax.experimental import pallas as pl
from jax.experimental.pallas import tpu as pltpu

EPS = 1e-8  # torch CosineSimilarity default eps

try:  # prefer scipy's C solver; fall back to a numpy-vectorized Hungarian
    from scipy.optimize import linear_sum_assignment as _lsa
except Exception:  # pragma: no cover
    _lsa = None


# ----------------------------------------------------------------------------
# VMEM budgeting: generation-aware, includes in-kernel temporaries + (8,128) padding
# ----------------------------------------------------------------------------
def _vmem_capacity_bytes():
    try:
        info = pltpu.get_tpu_info()
        cap = int(getattr(info, "vmem_capacity_bytes", 0) or 0)
        if cap > 0:
            return cap
    except Exception:
        pass
    return 64 * 1024 * 1024  # conservative default: v7x per-TensorCore VMEM


def _vmem_limit_bytes():
    cap = _vmem_capacity_bytes()
    # ~48 MiB on v7x (64 MiB physical), 96 MiB on v5e/v6e (128 MiB physical)
    return max(32 * 1024 * 1024, min(3 * cap // 4, 96 * 1024 * 1024))


def _pad(n, m):
    return max(m, ((n + m - 1) // m) * m)


def _tile_bytes(sub, lane, itemsize):
    # VMEM footprint of one [sub, lane] tile after (8, 128) layout padding.
    return _pad(sub, 8) * _pad(lane, 128) * itemsize


def _cost_bytes_per_batch(N1, N2, D):
    b = 2 * _tile_bytes(N1, D, 4) + 2 * _tile_bytes(N2, D, 4)   # double-buffered inputs
    b += 2 * _tile_bytes(N1, N2, 4)                             # double-buffered output
    b += _tile_bytes(N1, D, 2) + _tile_bytes(N2, D, 2)          # bf16 casts of a / b
    b += 2 * _tile_bytes(N1, N2, 4)                             # cross + scale temporaries
    return b


def _reorder_bytes_per_batch(N, D):
    b = 2 * 2 * _tile_bytes(N, D, 4)      # inputs s1, s2 (double-buffered)
    b += 2 * 2 * _tile_bytes(N, 1, 4)     # w, ci (lane-padded, double-buffered)
    b += 2 * 2 * _tile_bytes(N, D, 4)     # fused output, two halves (double-buffered)
    b += _tile_bytes(N, D, 2)             # bf16 s2 copy
    b += _tile_bytes(N, N, 2)             # one-hot permutation
    b += 3 * _tile_bytes(N, D, 4)         # gathered + two scaled halves
    return b


def _pick_bblk(B, bytes_per_batch, seq_len):
    """Largest batch block that fits the VMEM budget, leaves >=2 grid steps (v7x megacore),
    and (when cheap) makes bblk*N a multiple of 256 for MXU-native shapes."""
    budget = int(_vmem_limit_bytes() * 0.8)
    bblk = max(1, min(B, budget // max(1, bytes_per_batch)))
    if B >= 2:  # keep >=2 grid steps so "parallel" can shard across v7x's 2 TensorCores
        bblk = min(bblk, (B + 1) // 2)
    if seq_len > 0 and 256 % seq_len == 0:
        mult = 256 // seq_len
        if bblk >= mult:
            bblk -= bblk % mult
    return max(1, bblk)


def _host_chunks(B, bblk, target_chunks=4):
    """Split the batch into block-aligned chunks (>=2 blocks each) so host Hungarian
    solves can overlap device compute of later chunks."""
    nblk = -(-B // bblk)
    bpc = max(2, -(-nblk // target_chunks))
    chunks, blk0 = [], 0
    while blk0 < nblk:
        lo = blk0 * bblk
        hi = min(B, (blk0 + bpc) * bblk)
        chunks.append((blk0, lo, hi))
        blk0 += bpc
    return chunks


# ----------------------------------------------------------------------------
# Pallas kernel 1: batched cosine-similarity cost matrix (lane-dense layout)
# ----------------------------------------------------------------------------
def _cost_kernel(s1_ref, s2_ref, cost_ref):
    a = s1_ref[...]                                    # [Bb, N1, D] f32
    b = s2_ref[...]                                    # [Bb, N2, D] f32
    # MXU: bf16 inputs, f32 accumulation.
    # TODO(synk): for N2 >= ~128, feed seq2 as [B, D, N2] and use "bid,bdj->bij" so the
    # MXU RHS is in natural [K, N] form (skips the per-tile XLU relayout of s2).
    cross = jnp.einsum(
        "bid,bjd->bij",
        a.astype(jnp.bfloat16),
        b.astype(jnp.bfloat16),
        preferred_element_type=jnp.float32,
    )                                                  # [Bb, N1, N2]
    # Per-row inverse norms: EUP pushes drop from Bb*N1*N2 to Bb*(N1+N2); the f32
    # [Bb,N1,N2] denom temporary disappears.  The clamp keeps torch's
    # max(||a||*||b||, eps) product semantics: min(rsqrt(w1)*rsqrt(w2), 1/eps).
    inv1 = jax.lax.rsqrt(jnp.sum(a * a, axis=-1))      # [Bb, N1]
    inv2 = jax.lax.rsqrt(jnp.sum(b * b, axis=-1))      # [Bb, N2]
    scale = jnp.minimum(inv1[:, :, None] * inv2[:, None, :], 1.0 / EPS)
    cost_ref[...] = cross * scale


def _cosine_cost_chunk(s1_nd, s2_nd, bblk, blk_start, batch_count):
    """Cost matrix for batches [blk_start*bblk, blk_start*bblk + batch_count)."""
    B, N1, D = s1_nd.shape
    _, N2, _ = s2_nd.shape
    grid = (pl.cdiv(batch_count, bblk),)
    in_map = lambda b, _o=blk_start: (b + _o, 0, 0)
    # TODO(synk): for very large N/D also tile N1/N2 and add a D-reduction ("arbitrary")
    # grid axis with an f32 VMEM accumulator; block-over-batch is sufficient here.
    return pl.pallas_call(
        _cost_kernel,
        out_shape=jax.ShapeDtypeStruct((batch_count, N1, N2), jnp.float32),
        grid=grid,
        in_specs=[
            pl.BlockSpec((bblk, N1, D), in_map),
            pl.BlockSpec((bblk, N2, D), in_map),
        ],
        out_specs=pl.BlockSpec((bblk, N1, N2), lambda b: (b, 0, 0)),
        compiler_params=pltpu.CompilerParams(
            dimension_semantics=("parallel",),   # v7x: shard batch blocks across both TCs
            vmem_limit_bytes=_vmem_limit_bytes(),
        ),
    )(s1_nd, s2_nd)


def cosine_cost(seq1_nd, seq2_nd, bblk=None):
    """seq1_nd: [B, N1, D], seq2_nd: [B, N2, D] (lane-dense). Returns cost [B, N1, N2]."""
    B, N1, D = seq1_nd.shape
    _, N2, _ = seq2_nd.shape
    if bblk is None:
        bblk = _pick_bblk(B, _cost_bytes_per_batch(N1, N2, D), N1)
    return _cosine_cost_chunk(seq1_nd, seq2_nd, bblk, 0, B)


# ----------------------------------------------------------------------------
# Pallas kernel 2: batched reorder (one-hot gather) + weight scaling, fused output
# ----------------------------------------------------------------------------
def _reorder_kernel(s1_ref, s2_ref, w_ref, ci_ref, out_ref):
    s1 = s1_ref[...]                                   # [Bb, N, D] f32
    s2 = s2_ref[...]                                   # [Bb, N, D] f32
    w = w_ref[...]                                     # [Bb, N, 1] f32 assignment weights
    ci = ci_ref[...]                                   # [Bb, N, 1] int32 column assignment
    N = s1.shape[1]
    # One-hot permutation P[b, i, j] = 1 iff ci[b, i] == j; P @ s2 gathers rows:
    # gathered[b, i, :] = s2[b, ci[b, i], :].  iota is built as (1, N, N) and broadcast
    # over batch so no [Bb, N, N] int32 temporary is materialized.
    # TODO(synk): for large N, replace the one-hot matmul with a scalar-prefetch
    # (PrefetchScalarGridSpec / pl.Element) DMA gather of s2 rows; matmul is only kept
    # for small N where the O(N^2) perm is negligible.
    iota_j = jax.lax.broadcasted_iota(jnp.int32, (1, N, N), 2)
    perm = (iota_j == ci).astype(jnp.bfloat16)         # [Bb, N, N]
    gathered = jnp.einsum(
        "bij,bjd->bid",
        perm,
        s2.astype(jnp.bfloat16),
        preferred_element_type=jnp.float32,
    )                                                  # [Bb, N, D]
    out_ref[0] = s1 * w          # "row" half: w_i * seq1[:, i]
    out_ref[1] = gathered * w    # "col" half: w_i * seq2[:, col_ind[i]]


def reorder(seq1_nd, seq2_nd, weights, col_ind, bblk=None):
    """Inputs lane-dense [B, N, D]; weights/col_ind [B, N, 1].
    Returns fused [2, B, N, D] (row half at index 0, col half at index 1)."""
    B, N, D = seq1_nd.shape
    if bblk is None:
        bblk = _pick_bblk(B, _reorder_bytes_per_batch(N, D), N)
    grid = (pl.cdiv(B, bblk),)
    return pl.pallas_call(
        _reorder_kernel,
        out_shape=jax.ShapeDtypeStruct((2, B, N, D), jnp.float32),
        grid=grid,
        in_specs=[
            pl.BlockSpec((bblk, N, D), lambda b: (b, 0, 0)),
            pl.BlockSpec((bblk, N, D), lambda b: (b, 0, 0)),
            pl.BlockSpec((bblk, N, 1), lambda b: (b, 0, 0)),
            pl.BlockSpec((bblk, N, 1), lambda b: (b, 0, 0)),
        ],
        out_specs=pl.BlockSpec((2, bblk, N, D), lambda b: (0, b, 0, 0)),
        compiler_params=pltpu.CompilerParams(
            dimension_semantics=("parallel",),
            vmem_limit_bytes=_vmem_limit_bytes(),
        ),
    )(seq1_nd, seq2_nd, weights, col_ind)


# ----------------------------------------------------------------------------
# Host-side Hungarian (min-cost assignment).  scipy's C solver if available,
# otherwise a numpy-vectorized Jonker-Volgenant-style fallback.
# ----------------------------------------------------------------------------
def _hungarian_min_np(cost):
    cost = np.asarray(cost, dtype=np.float64)
    n = cost.shape[0]
    u = np.zeros(n + 1)
    v = np.zeros(n + 1)
    p = np.zeros(n + 1, dtype=np.int64)    # p[j] = row assigned to column j (1-based)
    way = np.zeros(n + 1, dtype=np.int64)
    for i in range(1, n + 1):
        p[0] = i
        j0 = 0
        minv = np.full(n + 1, np.inf)
        used = np.zeros(n + 1, dtype=bool)
        while True:
            used[j0] = True
            i0 = p[j0]
            free = ~used[1:]
            cur = cost[i0 - 1, :] - u[i0] - v[1:]
            upd = free & (cur < minv[1:])
            minv[1:][upd] = cur[upd]
            way[1:][upd] = j0
            masked = np.where(free, minv[1:], np.inf)
            j1 = int(np.argmin(masked)) + 1
            delta = masked[j1 - 1]
            u[p[used]] += delta
            v[used] -= delta
            minv[1:][free] -= delta
            j0 = j1
            if p[j0] == 0:
                break
        while True:
            j1 = way[j0]
            p[j0] = p[j1]
            j0 = j1
            if j0 == 0:
                break
    col_of_row = np.zeros(n, dtype=np.int32)
    for j in range(1, n + 1):
        if p[j] != 0:
            col_of_row[p[j] - 1] = j - 1
    return np.arange(n, dtype=np.int32), col_of_row


def _solve_assignment(cmat):
    if _lsa is not None:
        r, c = _lsa(cmat)
        return np.asarray(r, dtype=np.int32), np.asarray(c, dtype=np.int32)
    return _hungarian_min_np(cmat)


# ----------------------------------------------------------------------------
# Full forward (mirrors Hungarian.forward).  No learnable parameters exist.
# ----------------------------------------------------------------------------
def hungarian_forward(seq1, seq2, batch_dim_seq=True, force_diag_non_zero=True):
    seq1 = jnp.asarray(seq1, dtype=jnp.float32)
    seq2 = jnp.asarray(seq2, dtype=jnp.float32)
    if batch_dim_seq:
        # module layout [B, D, N]  ->  lane-dense kernel layout [B, N, D]
        # TODO(synk): for N >= 128 fold these transposes into the kernels (trans flags /
        # [B, D, N] RHS layout) instead of a wrapper-side HBM pass.
        s1_nd = jnp.transpose(seq1, (0, 2, 1))
        s2_nd = jnp.transpose(seq2, (0, 2, 1))
    else:
        # input [B, N, D]; the torch module transposes to [B, D, N] internally,
        # which corresponds exactly to our lane-dense layout already.
        s1_nd = seq1
        s2_nd = seq2
    B, N, D = s1_nd.shape
    assert s2_nd.shape == (B, N, D), "only the square (N1 == N2) case is supported"
    # TODO(synk): the N1 != N2 None/zero-padding path of the reference is not implemented.

    # --- Pallas kernel 1: cosine-similarity cost matrix, dispatched in batch chunks ---
    # All chunks are enqueued asynchronously; device_get of chunk k only waits on that
    # chunk, so the host Hungarian solve overlaps device compute of later chunks.
    bblk = _pick_bblk(B, _cost_bytes_per_batch(N, N, D), N)
    chunks = _host_chunks(B, bblk)
    cost_parts = [
        _cosine_cost_chunk(s1_nd, s2_nd, bblk, blk0, hi - lo) for blk0, lo, hi in chunks
    ]

    # --- Host: Hungarian assignment (data-dependent, sequential) ---
    col_ind = np.zeros((B, N), dtype=np.int32)
    weights = np.zeros((B, N), dtype=np.float32)
    for (blk0, lo, hi), part in zip(chunks, cost_parts):
        part_np = np.asarray(jax.device_get(part))
        for k in range(hi - lo):
            cmat = part_np[k].copy()
            if force_diag_non_zero:
                np.fill_diagonal(cmat, 0.5)
            r, c = _solve_assignment(cmat)        # reference minimizes the (filled) matrix
            col_ind[lo + k] = c
            # NOTE: torch's `matrix.detach().numpy()` aliases `matrix`, so the diagonal fill
            # is visible when the reference reads `matrix[r, c]`; weights therefore come from
            # the (possibly diag-filled) matrix, matching the reference exactly.
            weights[lo + k] = cmat[r, c]

    # --- Pallas kernel 2: batched one-hot gather + weight scaling, fused output ---
    both = reorder(
        s1_nd,
        s2_nd,
        jnp.asarray(weights).reshape(B, N, 1),
        jnp.asarray(col_ind).reshape(B, N, 1),
    )                                              # [2, B, N, D]
    # single layout pass back to module layout: [B, 2*D, N]  (no concatenate needed)
    return jnp.transpose(both, (1, 0, 3, 2)).reshape(B, 2 * D, N)


if __name__ == "__main__":
    key = jax.random.PRNGKey(0)
    k1, k2 = jax.random.split(key)
    B, D, N = 2, 32, 8  # batch, feature dim, sequence length
    seq1 = jax.random.normal(k1, (B, D, N), dtype=jnp.float32)
    seq2 = jax.random.normal(k2, (B, D, N), dtype=jnp.float32)

    out = jax.block_until_ready(hungarian_forward(seq1, seq2))
    assert out.shape == (B, 2 * D, N), out.shape

    # --- sanity check 1: Pallas cosine cost vs numpy reference (bf16 MXU -> loose tol) ---
    s1n = np.transpose(np.asarray(seq1), (0, 2, 1))   # [B, N, D]
    s2n = np.transpose(np.asarray(seq2), (0, 2, 1))
    cross = np.einsum("bid,bjd->bij", s1n, s2n)
    w1 = np.sum(s1n * s1n, axis=-1)
    w2 = np.sum(s2n * s2n, axis=-1)
    ref_cost = cross / np.sqrt(np.maximum(w1[:, :, None] * w2[:, None, :], EPS * EPS))
    got_cost = np.asarray(jax.device_get(cosine_cost(jnp.asarray(s1n), jnp.asarray(s2n))))
    assert np.allclose(got_cost, ref_cost, rtol=2e-2, atol=2e-2), float(
        np.max(np.abs(got_cost - ref_cost))
    )

    # --- sanity check 2: full forward vs numpy reorder built from the SAME device cost
    #     matrix (identical host assignment -> only kernel math is compared) ---
    ref_out = np.zeros((B, 2 * D, N), dtype=np.float32)
    s1_full = np.asarray(seq1)
    s2_full = np.asarray(seq2)
    for b in range(B):
        cm = got_cost[b].copy()
        np.fill_diagonal(cm, 0.5)
        r, c = _solve_assignment(cm)
        w = cm[r, c].astype(np.float32)
        ref_out[b, :D, :] = s1_full[b] * w[None, :]
        ref_out[b, D:, :] = s2_full[b][:, c] * w[None, :]
    assert np.allclose(np.asarray(out), ref_out, rtol=2e-2, atol=2e-2), float(
        np.max(np.abs(np.asarray(out) - ref_out))
    )

    print("KERNEL_OK")
</pallas_src>

<mosaic_0001>
module attributes {stable_mosaic.version = 11 : i64} {
  func.func @_cost_kernel(%arg0: i32, %arg1: memref<1x8x32xf32, #tpu.memory_space<vmem>>, %arg2: memref<1x8x32xf32, #tpu.memory_space<vmem>>, %arg3: memref<1x8x8xf32, #tpu.memory_space<vmem>>) attributes {dimension_semantics = [#tpu.dimension_semantics<parallel>], iteration_bounds = array<i64: 2>, scalar_prefetch = 0 : i64, scratch_operands = 0 : i64, tpu.core_type = #tpu.core_type<tc>, window_params = [{transform_indices = @transform_0, window_bounds = array<i64: 1, 8, 32>}, {transform_indices = @transform_1, window_bounds = array<i64: 1, 8, 32>}, {transform_indices = @transform_2, window_bounds = array<i64: 1, 8, 8>}]} {
    %c0 = arith.constant 0 : index
    %c0_0 = arith.constant 0 : index
    %c0_1 = arith.constant 0 : index
    %0 = vector.load %arg1[%c0, %c0_0, %c0_1] : memref<1x8x32xf32, #tpu.memory_space<vmem>>, vector<1x8x32xf32>
    %c0_2 = arith.constant 0 : index
    %c0_3 = arith.constant 0 : index
    %c0_4 = arith.constant 0 : index
    %1 = vector.load %arg2[%c0_2, %c0_3, %c0_4] : memref<1x8x32xf32, #tpu.memory_space<vmem>>, vector<1x8x32xf32>
    %2 = arith.truncf %0 : vector<1x8x32xf32> to vector<1x8x32xbf16>
    %3 = arith.truncf %1 : vector<1x8x32xf32> to vector<1x8x32xbf16>
    "tpu.trace_start"() <{level = 10 : i32, message = "bid,bjd->bij"}> : () -> ()
    %cst = arith.constant dense<0.000000e+00> : vector<1x8x8xf32>
    %4 = tpu.matmul %2, %3, %cst {dimension_numbers = #tpu.dot_dimension_numbers<[2], [2], [1], [1], [0, 0, 0, 1, 1, 1], [0], [0]>} : vector<1x8x32xbf16>, vector<1x8x32xbf16>, vector<1x8x8xf32> -> vector<1x8x8xf32>
    "tpu.trace_stop"() : () -> ()
    %5 = arith.mulf %0, %0 : vector<1x8x32xf32>
    %cst_5 = arith.constant dense<0.000000e+00> : vector<1x8xf32>
    %6 = vector.multi_reduction <add>, %5, %cst_5 [2] : vector<1x8x32xf32> to vector<1x8xf32>
    %7 = math.rsqrt %6 : vector<1x8xf32>
    %8 = arith.mulf %1, %1 : vector<1x8x32xf32>
    %cst_6 = arith.constant dense<0.000000e+00> : vector<1x8xf32>
    %9 = vector.multi_reduction <add>, %8, %cst_6 [2] : vector<1x8x32xf32> to vector<1x8xf32>
    %10 = math.rsqrt %9 : vector<1x8xf32>
    %11 = vector.shape_cast %7 : vector<1x8xf32> to vector<1x8x1xf32>
    %12 = vector.shape_cast %10 : vector<1x8xf32> to vector<1x1x8xf32>
    %13 = vector.broadcast %11 : vector<1x8x1xf32> to vector<1x8x8xf32>
    %14 = vector.broadcast %12 : vector<1x1x8xf32> to vector<1x8x8xf32>
    %15 = arith.mulf %13, %14 : vector<1x8x8xf32>
    %cst_7 = arith.constant 1.000000e+08 : f32
    %16 = vector.broadcast %cst_7 : f32 to vector<1x8x8xf32>
    %17 = arith.minimumf %15, %16 : vector<1x8x8xf32>
    %18 = arith.mulf %4, %17 : vector<1x8x8xf32>
    %c0_8 = arith.constant 0 : index
    %c0_9 = arith.constant 0 : index
    %c0_10 = arith.constant 0 : index
    %19 = vector.load %arg3[%c0_8, %c0_9, %c0_10] : memref<1x8x8xf32, #tpu.memory_space<vmem>>, vector<1x8x8xf32>
    tpu.vector_store %arg3[%c0_8, %c0_9, %c0_10], %18 {strides = array<i32>} : memref<1x8x8xf32, #tpu.memory_space<vmem>>, vector<1x8x8xf32>,
    return
  }
  func.func @transform_0(%arg0: i32) -> (i32, i32, i32) {
    %c0_i32 = arith.constant 0 : i32
    %0 = arith.addi %arg0, %c0_i32 : i32
    %c0_i32_0 = arith.constant 0 : i32
    %c0_i32_1 = arith.constant 0 : i32
    %c0_i32_2 = arith.constant 0 : i32
    return %0, %c0_i32_0, %c0_i32_1 : i32, i32, i32
  }
  func.func @transform_1(%arg0: i32) -> (i32, i32, i32) {
    %c0_i32 = arith.constant 0 : i32
    %0 = arith.addi %arg0, %c0_i32 : i32
    %c0_i32_0 = arith.constant 0 : i32
    %c0_i32_1 = arith.constant 0 : i32
    %c0_i32_2 = arith.constant 0 : i32
    return %0, %c0_i32_0, %c0_i32_1 : i32, i32, i32
  }
  func.func @transform_2(%arg0: i32) -> (i32, i32, i32) {
    %c0_i32 = arith.constant 0 : i32
    %c0_i32_0 = arith.constant 0 : i32
    %c0_i32_1 = arith.constant 0 : i32
    return %arg0, %c0_i32, %c0_i32_0 : i32, i32, i32
  }
}

</mosaic_0001>

<llo_original>
// kernel: tpu_custom_call.1
$region0: #{tpu_custom_call.1}
  #allocation0 [shape = 'u32[]', space=smem, size = 0x4, offset = 0x4, fixed_abs, tag = 'smem constant byte address 0x4 - core index']
  #allocation1 [shape = 'u32[72,128]{1,0:T(1,128)}', space=vmem, size = 0x9000, scoped, tag = 'internal scratch']
  %s0 = inlined_call_operand.hbm [shape: f32[2,8,32], index: 0, kind: input, shape index: {}]
  %s1 = inlined_call_operand.hbm [shape: f32[2,8,32], index: 1, kind: input, shape index: {}]
  %s2 = inlined_call_operand.hbm [shape: f32[2,8,8], index: 2, kind: output, shape index: {}]
  %s3 = sld [smem:[#allocation0]]
  $region49: #{tpu_custom_call.1} parent=0
    _
  %s5 = ssub.s32 1, %s3
  %s6 = scalar_select 0, %s5, %s3
  $region1: #{tpu_custom_call.1} parent=0
    #allocation2 [shape = 'u8[8192]{0}', space=vmem, size = 0x2000, scoped, tag = 'input window, operand 0']
    #allocation3 [shape = 's32[2]{0}', space=sflag, size = 0x8, scoped, tag = 'scoped memory for tpu_custom_call.1']
    #allocation4 [shape = 's32[2]{0}', space=sflag, size = 0x8, scoped, tag = 'scoped memory for tpu_custom_call.1']
    #allocation5 [shape = 'u8[8192]{0}', space=vmem, size = 0x2000, scoped, tag = 'input window, operand 1']
    #allocation6 [shape = 's32[2]{0}', space=sflag, size = 0x8, scoped, tag = 'scoped memory for tpu_custom_call.1']
    #allocation7 [shape = 'u8[8192]{0}', space=vmem, size = 0x2000, scoped, tag = 'output window, operand 0']
    %7 = vsyncpa [#allocation3], 0
    %s8 = scalar_lea.sflag [#allocation3], 1
    %9 = vsyncpa %s8, 0
    %10 = vsyncpa [#allocation6], 0
    %s11 = scalar_lea.sflag [#allocation6], 1
    %12 = vsyncpa %s11, 0
    %13 = vsyncpa [#allocation4], 0
    %s14 = scalar_lea.sflag [#allocation4], 1
    %15 = vsyncpa %s14, 0
    loop: start=0, step=1, limit=4
    $region2: #{tpu_custom_call.1} parent=1 // loop_pre_header
      _
    $region3: #{tpu_custom_call.1} parent=1 // loop_header
      %s17 = sphi 0, %s21
      %p18 = scmp.ge.s32.totalorder %s17, 4
      %s27 = sphi 0, %s29
      %s30 = sphi 0, %s27
      %s31 = sphi 0, %s30
      %s47 = sphi 0, %s31
      %s53 = sphi 0, %s55
      %s56 = sphi 0, %s53
      %s57 = sphi 0, %s56
      %s73 = sphi 0, %s57
      %s79 = sphi 0, %s81
      %s82 = sphi 0, %s79
      %s83 = sphi 0, %s82
      %s99 = sphi 0, %s83
    $region4: #{tpu_custom_call.1} parent=1 // loop_header_branch
      %20 = sbr.rel (%p18) target = $region8
    $region5: #{tpu_custom_call.1} parent=1 // loop_body
      %s22 = ssub.s32 %s17, 1
      %s23 = ssub.s32 %s17, 2
      %s24 = sadd.s32 %s17, 1
      %s25 = ssub.s32 %s17, %s24
      %p26 = scmp.eq.s32.totalorder %s25, 0
      %s28 = sadd.s32 %s27, 1
      %s29 = scalar_select %p26, %s27, %s28
      %p32 = pneg %p26
      %p33 = scmp.eq.s32.totalorder %s17, 1
      %p34 = por %p32, %p33
      %p35 = scmp.ne.s32.totalorder %s27, %s30
      %p36 = scmp.eq.s32.totalorder %s17, 0
      %p37 = por %p35, %p36
      %p38 = scmp.ne.s32.totalorder %s27, %s30
      %p39 = scmp.eq.s32.totalorder %s22, 1
      %p40 = por %p38, %p39
      %p41 = scmp.ne.s32.totalorder %s30, %s31
      %p42 = scmp.eq.s32.totalorder %s22, 0
      %p43 = por %p41, %p42
      %p44 = scmp.ne.s32.totalorder %s30, %s31
      %p45 = scmp.eq.s32.totalorder %s23, 1
      %p46 = por %p44, %p45
      %p48 = scmp.ne.s32.totalorder %s31, %s47
      %p49 = scmp.eq.s32.totalorder %s23, 0
      %p50 = por %p48, %p49
      %s51 = ssub.s32 %s17, %s24
      %p52 = scmp.eq.s32.totalorder %s51, 0
      %s54 = sadd.s32 %s53, 1
      %s55 = scalar_select %p52, %s53, %s54
      %p58 = pneg %p52
      %p59 = scmp.eq.s32.totalorder %s17, 1
      %p60 = por %p58, %p59
      %p61 = scmp.ne.s32.totalorder %s53, %s56
      %p62 = scmp.eq.s32.totalorder %s17, 0
      %p63 = por %p61, %p62
      %p64 = scmp.ne.s32.totalorder %s53, %s56
      %p65 = scmp.eq.s32.totalorder %s22, 1
      %p66 = por %p64, %p65
      %p67 = scmp.ne.s32.totalorder %s56, %s57
      %p68 = scmp.eq.s32.totalorder %s22, 0
      %p69 = por %p67, %p68
      %p70 = scmp.ne.s32.totalorder %s56, %s57
      %p71 = scmp.eq.s32.totalorder %s23, 1
      %p72 = por %p70, %p71
      %p74 = scmp.ne.s32.totalorder %s57, %s73
      %p75 = scmp.eq.s32.totalorder %s23, 0
      %p76 = por %p74, %p75
      %s77 = ssub.s32 %s17, %s24
      %p78 = scmp.eq.s32.totalorder %s77, 0
      %s80 = sadd.s32 %s79, 1
      %s81 = scalar_select %p78, %s79, %s80
      %p84 = pneg %p78
      %p85 = scmp.eq.s32.totalorder %s17, 1
      %p86 = por %p84, %p85
      %p87 = scmp.ne.s32.totalorder %s79, %s82
      %p88 = scmp.eq.s32.totalorder %s17, 0
      %p89 = por %p87, %p88
      %p90 = scmp.ne.s32.totalorder %s79, %s82
      %p91 = scmp.eq.s32.totalorder %s22, 1
      %p92 = por %p90, %p91
      %p93 = scmp.ne.s32.totalorder %s82, %s83
      %p94 = scmp.eq.s32.totalorder %s22, 0
      %p95 = por %p93, %p94
      %p96 = scmp.ne.s32.totalorder %s82, %s83
      %p97 = scmp.eq.s32.totalorder %s23, 1
      %p98 = por %p96, %p97
      %p100 = scmp.ne.s32.totalorder %s83, %s99
      %p101 = scmp.eq.s32.totalorder %s23, 0
      %p102 = por %p100, %p101
      %p103 = scmp.le.s32.totalorder 1, %s17
      %p104 = scmp.lt.s32.totalorder %s17, 3
      %p105 = pnand %p103, %p104
      %p106 = pneg %p105
      // Predicated region
      $region9: #{tpu_custom_call.1} parent=5 // pred_check
        _
      $region10: #{tpu_custom_call.1} parent=5 // pred_check_branch
        %108 = sbr.rel (%p105) target = $region12
      $region11: #{tpu_custom_call.1} parent=5 // pred_region
        %s109 = ssub.s32 %s17, 1
      $region12: #{tpu_custom_call.1} parent=5 // pred_fallthru
        _
      %p110 = scmp.lt.s32.totalorder %s17, 2
      // Predicated region
      $region13: #{tpu_custom_call.1} parent=5 // pred_check
        %p111 = pneg %p110
      $region14: #{tpu_custom_call.1} parent=5 // pred_check_branch
        %113 = sbr.rel (%p111) target = $region16
      $region15: #{tpu_custom_call.1} parent=5 // pred_region
        // Predicated region
        $region17: #{tpu_custom_call.1} parent=15 // pred_check
          %p114 = pneg %p37
        $region18: #{tpu_custom_call.1} parent=15 // pred_check_branch
          %116 = sbr.rel (%p114) target = $region20
        $region19: #{tpu_custom_call.1} parent=15 // pred_region
          %s117 = sand.u32 %s27, 1
          %s118 = scalar_lea.sflag [#allocation3], %s117
          %s119 = sand.u32 %s27, 1
          %s120 = smul.addr %s119, 8
          %s121 = scalar_lea.vmem [#allocation2], %s120
          %123 = vsyncadd %s118, 0
          %s124 = smul.addr %s17, 8
          %s125 = scalar_lea.hbm %s0, %s124
          %s127 = sshll.u32 %s125, 4
          %s128 = int_to_ptr.hbm [resolvable:$true] %s127
          %s129 = sshll.u32 %s121, 4
          %s130 = int_to_ptr.vmem [resolvable:$true] %s129
          %132 = dma.hbm_to_vmem [thread:$0]  %s128, 128, %s130, %s118
        $region20: #{tpu_custom_call.1} parent=15 // pred_fallthru
          _
        // Predicated region
        $region21: #{tpu_custom_call.1} parent=15 // pred_check
          %p133 = pneg %p63
        $region22: #{tpu_custom_call.1} parent=15 // pred_check_branch
          %135 = sbr.rel (%p133) target = $region24
        $region23: #{tpu_custom_call.1} parent=15 // pred_region
          %s136 = sand.u32 %s53, 1
          %s137 = scalar_lea.sflag [#allocation6], %s136
          %s138 = sand.u32 %s53, 1
          %s139 = smul.addr %s138, 8
          %s140 = scalar_lea.vmem [#allocation5], %s139
          %142 = vsyncadd %s137, 0
          %s143 = smul.addr %s17, 8
          %s144 = scalar_lea.hbm %s1, %s143
          %s146 = sshll.u32 %s144, 4
          %s147 = int_to_ptr.hbm [resolvable:$true] %s146
          %s148 = sshll.u32 %s140, 4
          %s149 = int_to_ptr.vmem [resolvable:$true] %s148
          %151 = dma.hbm_to_vmem [thread:$0]  %s147, 128, %s149, %s137
        $region24: #{tpu_custom_call.1} parent=15 // pred_fallthru
          _
      $region16: #{tpu_custom_call.1} parent=5 // pred_fallthru
        _
      %p152 = scmp.le.s32.totalorder 1, %s17
      %p153 = scmp.lt.s32.totalorder %s17, 3
      %p154 = pnand %p152, %p153
      %p155 = pneg %p154
      // Predicated region
      $region25: #{tpu_custom_call.1} parent=5 // pred_check
        _
      $region26: #{tpu_custom_call.1} parent=5 // pred_check_branch
        %157 = sbr.rel (%p154) target = $region28
      $region27: #{tpu_custom_call.1} parent=5 // pred_region
        %s158 = ssub.s32 %s17, 1
        %s159 = sand.u32 %s30, 1
        %s160 = scalar_lea.sflag [#allocation3], %s159
        %s161 = sand.u32 %s30, 1
        %s162 = smul.addr %s161, 8
        %s163 = scalar_lea.vmem [#allocation2], %s162
        // Predicated region
        $region29: #{tpu_custom_call.1} parent=27 // pred_check
          %p164 = pneg %p43
        $region30: #{tpu_custom_call.1} parent=27 // pred_check_branch
          %166 = sbr.rel (%p164) target = $region32
        $region31: #{tpu_custom_call.1} parent=27 // pred_region
          %168 = dma.done %s160, 128
        $region32: #{tpu_custom_call.1} parent=27 // pred_fallthru
          _
        %s169 = sand.u32 %s56, 1
        %s170 = scalar_lea.sflag [#allocation6], %s169
        %s171 = sand.u32 %s56, 1
        %s172 = smul.addr %s171, 8
        %s173 = scalar_lea.vmem [#allocation5], %s172
        // Predicated region
        $region33: #{tpu_custom_call.1} parent=27 // pred_check
          %p174 = pneg %p69
        $region34: #{tpu_custom_call.1} parent=27 // pred_check_branch
          %176 = sbr.rel (%p174) target = $region36
        $region35: #{tpu_custom_call.1} parent=27 // pred_region
          %178 = dma.done %s170, 128
        $region36: #{tpu_custom_call.1} parent=27 // pred_fallthru
          _
        %s179 = sand.u32 %s30, 1
        %s180 = scalar_lea.sflag [#allocation3], %s179
        %s181 = sand.u32 %s30, 1
        %s182 = smul.addr %s181, 8
        %s183 = scalar_lea.vmem [#allocation2], %s182
        %p184 = pneg %p43
        %p185 = pneg %p40
        %s186 = sand.u32 %s56, 1
        %s187 = scalar_lea.sflag [#allocation6], %s186
        %s188 = sand.u32 %s56, 1
        %s189 = smul.addr %s188, 8
        %s190 = scalar_lea.vmem [#allocation5], %s189
        %p191 = pneg %p69
        %p192 = pneg %p66
        %p193 = pneg %p95
        %p194 = pneg %p92
        %s195 = sand.u32 %s82, 1
        %s196 = scalar_lea.sflag [#allocation4], %s195
        %s197 = sand.u32 %s82, 1
        %s198 = smul.addr %s197, 8
        %s199 = scalar_lea.vmem [#allocation7], %s198
        %v201 = vld [vmem:[%s163] sm:$0xff]
        %v202 = vld [vmem:[%s173] sm:$0xff]
        %v203 = vpack.c.bf16 %v201, %v201
        %v204 = vpack.c.bf16 %v202, %v202
        %vm205 = vcmask 261120
        %v207 = vsel %vm205, %v203, 0
        %v210 = vsel %vm205, %v204, 0
        %212 = vmatpush.bf16.xpose.msra.mxu0 0
        %213 = vmatpush.bf16.xpose.msra.mxu0 0
        %214 = vmatpush.bf16.xpose.msra.mxu0 0
        %215 = vmatpush.bf16.xpose.msra.mxu0 0
        %216 = vmatpush.bf16.xpose.msra.mxu0 0
        %217 = vmatpush.bf16.xpose.msra.mxu0 0
        %218 = vmatpush.bf16.xpose.msra.mxu0 0
        %219 = vmatpush.bf16.xpose.msra.mxu0 %v210
        %220 = vmatmul.bf16.gmra.mxu0 %v207
        %v221 = vpop.f32.mrf.mxu0
        %v222 = vadd.f32 0.0, %v221
        %v223 = vpop.f32.mrf.mxu0
        %224 = vdwg.mxu0
        %v225 = vmul.f32 %v201, %v201
        %v226 = vsel %vm205, %v225, 0.0
        %227 = vadd.xlane.f32.xlu0 %v226
        %v228 = vpop.xlane.xlu0 %227
        %v229 = vrsqrt.pop %v228
        %v230 = vmul.f32 %v229, %v228
        %v231 = vmul.f32 %v230, %v229
        %v232 = vmul.f32 0.5, %v231
        %v233 = vsub.f32 1.5, %v232
        %v234 = vmul.f32 %v229, %v233
        %vm235 = vweird.f32 %v228
        %vm236 = vweird.f32 %v229
        %vm237 = vmor %vm235, %vm236
        %v238 = vsel %vm237, %v229, %v234
        %v239 = vmul.f32 %v202, %v202
        %v240 = vsel %vm205, %v239, 0.0
        %241 = vadd.xlane.f32.xlu0 %v240
        %v242 = vpop.xlane.xlu0 %241
        %v243 = vrsqrt.pop %v242
        %v244 = vmul.f32 %v243, %v242
        %v245 = vmul.f32 %v244, %v243
        %v246 = vmul.f32 0.5, %v245
        %v247 = vsub.f32 1.5, %v246
        %v248 = vmul.f32 %v243, %v247
        %vm249 = vweird.f32 %v242
        %vm250 = vweird.f32 %v243
        %vm251 = vmor %vm249, %vm250
        %v252 = vsel %vm251, %v243, %v248
        %v254 = vlaneseq
        %v255 = vand.u32 %v254, 127
        %v256 = vperm.slane %v252, %v255
        %vm257 = vcmask 1042434
        %v258 = vsel %vm257, %v256, %v256
        %vm259 = vcmask 1043459
        %v260 = vsel %vm259, %v256, %v258
        %vm261 = vcmask 1044484
        %v262 = vsel %vm261, %v256, %v260
        %vm263 = vcmask 1045509
        %v264 = vsel %vm263, %v256, %v262
        %vm265 = vcmask 1046534
        %v266 = vsel %vm265, %v256, %v264
        %vm267 = vcmask 1047559
        %v268 = vsel %vm267, %v256, %v266
        %v270 = vmul.f32 %v238, %v268
        %v271 = vmin.f32 %v270, 1e+08
        %v272 = vmul.f32 %v222, %v271
        %vm273 = vcmask 64512
        %274 = vst.msk [vmem:[%s199] sm:$0xff] %vm273, %v272
        %s275 = sand.u32 %s82, 1
        %s276 = scalar_lea.sflag [#allocation4], %s275
        %s277 = sand.u32 %s82, 1
        %s278 = smul.addr %s277, 8
        %s279 = scalar_lea.vmem [#allocation7], %s278
        // Predicated region
        $region37: #{tpu_custom_call.1} parent=27 // pred_check
          %p280 = pneg %p92
        $region38: #{tpu_custom_call.1} parent=27 // pred_check_branch
          %282 = sbr.rel (%p280) target = $region40
        $region39: #{tpu_custom_call.1} parent=27 // pred_region
          %284 = vsyncadd %s276, 0
          %s285 = smul.addr %s22, 8
          %s286 = scalar_lea.hbm %s2, %s285
          %s288 = sshll.u32 %s279, 4
          %s289 = int_to_ptr.vmem [resolvable:$true] %s288
          %s290 = sshll.u32 %s286, 4
          %s291 = int_to_ptr.hbm [resolvable:$true] %s290
          %293 = dma.vmem_to_hbm [thread:$0]  %s289, 128, %s291, %s276
        $region40: #{tpu_custom_call.1} parent=27 // pred_fallthru
          _
      $region28: #{tpu_custom_call.1} parent=5 // pred_fallthru
        _
      %p294 = scmp.le.s32.totalorder 2, %s17
      // Predicated region
      $region41: #{tpu_custom_call.1} parent=5 // pred_check
        %p295 = pneg %p294
      $region42: #{tpu_custom_call.1} parent=5 // pred_check_branch
        %297 = sbr.rel (%p295) target = $region44
      $region43: #{tpu_custom_call.1} parent=5 // pred_region
        %s298 = ssub.s32 %s17, 2
        // Predicated region
        $region45: #{tpu_custom_call.1} parent=43 // pred_check
          %p299 = pneg %p98
        $region46: #{tpu_custom_call.1} parent=43 // pred_check_branch
          %301 = sbr.rel (%p299) target = $region48
        $region47: #{tpu_custom_call.1} parent=43 // pred_region
          %s302 = sand.u32 %s83, 1
          %s303 = scalar_lea.sflag [#allocation4], %s302
          %s304 = sand.u32 %s83, 1
          %s305 = smul.addr %s304, 8
          %s306 = scalar_lea.vmem [#allocation7], %s305
          %308 = dma.done %s303, 128
        $region48: #{tpu_custom_call.1} parent=43 // pred_fallthru
          _
      $region44: #{tpu_custom_call.1} parent=5 // pred_fallthru
        _
    $region6: #{tpu_custom_call.1} parent=1 // loop_footer
      %s21 = sadd.s32 1, %s17
    $region7: #{tpu_custom_call.1} parent=1 // loop_footer_branch
      %16 = sbr.rel target = $region3
    $region8: #{tpu_custom_call.1} parent=1 // loop_exit
      _
    %309 = vsyncpa [#allocation3], 1
    %s310 = scalar_lea.sflag [#allocation3], 1
    %311 = vsyncpa %s310, 1
    %312 = vsyncpa [#allocation6], 1
    %s313 = scalar_lea.sflag [#allocation6], 1
    %314 = vsyncpa %s313, 1
    %315 = vsyncpa [#allocation4], 1
    %s316 = scalar_lea.sflag [#allocation4], 1
    %317 = vsyncpa %s316, 1

</llo_original>
